<compile_context>
chip_gen: v7x
topology: tpu7x:2x2x1
jax: 0.10.0
libtpu: 0.0.40
codegen_flags: <defaults>
</compile_context>

<pallas_src>
from collections import namedtuple
import functools

import jax
import jax.numpy as jnp
from jax.experimental import pallas as pl
from jax.experimental.pallas import tpu as pltpu

Normal = namedtuple("Normal", ["loc", "scale"])
# TODO(synk): torch.distributions.normal.Normal has no Pallas/JAX-array equivalent here;
#             we return a (loc, scale) namedtuple instead.


def _round_up(x, m):
    return ((x + m - 1) // m) * m


def _make_decoder_kernel(num_layers, d_in):
    """Kernel for one (batch, set-tile) grid cell; set dim is on lanes.

    refs = [rep0_ref, x_ref, w0xT_ref, (w1T, b1), ..., out_ref]
      rep0_ref : (1, H0, 1) f32   precomputed rep @ W0[:R] + b0 (per batch)
      x_ref    : (1, D, TS)       target_x tile (lane-dense along the set dim)
      w0xT_ref : (H0, D)    f32   x-rows of W0, transposed
      wiT      : (H_i, H_{i-1})   transposed hidden / output weights
      bi       : (H_i, 1)   f32
      out_ref  : (1, 2, TS) f32   row 0 = mu, row 1 = sigma
    """

    def kernel(*refs):
        rep0_ref, x_ref, w0xT_ref = refs[:3]
        rest = refs[3:3 + 2 * (num_layers - 1)]
        out_ref = refs[3 + 2 * (num_layers - 1)]

        x = x_ref[0]                                   # (D, TS)
        rep0 = rep0_ref[0]                             # (H0, 1) f32

        # --- Layer 0: concat fused via split W0; rep part hoisted to wrapper. ---
        if d_in <= 8:
            # Tiny contraction dim -> broadcast-FMAs on the VPU (skip the MXU).
            h = jnp.broadcast_to(rep0, (rep0.shape[0], x.shape[1]))
            for di in range(d_in):
                h = h + (w0xT_ref[:, di:di + 1].astype(jnp.float32)
                         * x[di:di + 1, :].astype(jnp.float32))
        else:
            h = jnp.dot(w0xT_ref[...].astype(x.dtype), x,
                        preferred_element_type=jnp.float32) + rep0
        if num_layers > 1:
            h = jnp.maximum(h, 0.0)

        # --- Hidden / output layers: h <- W_i^T @ h + b_i (h kept in f32). ---
        for i in range(num_layers - 1):
            wT_ref = rest[2 * i]
            b = rest[2 * i + 1][...]                   # (H_i, 1) f32
            h = jnp.dot(wT_ref[...], h.astype(wT_ref.dtype),
                        preferred_element_type=jnp.float32) + b
            if i < num_layers - 2:
                h = jnp.maximum(h, 0.0)

        # --- Epilogue: stable softplus only on the sigma row (sublane slice). ---
        mu = h[0:1, :]                                 # (1, TS)
        ls = h[1:2, :]                                 # (1, TS)
        softplus = jnp.maximum(ls, 0.0) + jnp.log1p(jnp.exp(-jnp.abs(ls)))
        sigma = 0.1 + 0.9 * softplus
        out_ref[0] = jnp.concatenate([mu, sigma], axis=0).astype(out_ref.dtype)

    return kernel


def init_params(key, sizes):
    """Deterministic init mimicking nn.Linear default U(-1/sqrt(fan_in), +1/sqrt(fan_in))."""
    params = []
    for i in range(len(sizes) - 1):
        fan_in, fan_out = sizes[i], sizes[i + 1]
        key, kw, kb = jax.random.split(key, 3)
        bound = 1.0 / jnp.sqrt(fan_in)
        w = jax.random.uniform(kw, (fan_in, fan_out), jnp.float32, -bound, bound)
        b = jax.random.uniform(kb, (1, fan_out), jnp.float32, -bound, bound)
        params.append((w, b))
    return params


@functools.partial(jax.jit, static_argnames=("matmul_dtype", "tile_s", "s_pad"))
def _run_decoder(params, representation, target_x, *, matmul_dtype, tile_s, s_pad):
    """params: tuple of (w, b); representation (B, R); target_x (B, S, D)."""
    B, S, D = target_x.shape
    R = representation.shape[-1]
    num_layers = len(params)

    # Hoist the per-batch rep projection (degenerate M=1, K=R matvec) out of the grid.
    w0, b0 = params[0]
    H0 = w0.shape[1]
    rep0 = (representation @ w0[:R, :] + b0)[:, :, None]              # (B, H0, 1) f32

    # Transposed (+ tail-padded) target_x: set dim on lanes; one fused copy under jit.
    x_t = jnp.swapaxes(target_x, 1, 2)                                # (B, D, S)
    if s_pad != S:
        x_t = jnp.pad(x_t, ((0, 0), (0, 0), (0, s_pad - S)))
    x_t = x_t.astype(matmul_dtype)

    # Pre-transposed weights (cast to matmul dtype once, in HBM), (H, 1) f32 biases.
    flat = [jnp.transpose(w0[R:, :])]                                 # (H0, D) f32
    for w, b in params[1:]:
        flat.append(jnp.transpose(w).astype(matmul_dtype))            # (H_out, H_in)
        flat.append(jnp.reshape(b, (-1, 1)).astype(jnp.float32))      # (H_out, 1)

    kernel = _make_decoder_kernel(num_layers, D)
    grid = (B, s_pad // tile_s)

    in_specs = [
        pl.BlockSpec((1, H0, 1), lambda b, s: (b, 0, 0)),             # rep@W0[:R]+b0
        pl.BlockSpec((1, D, tile_s), lambda b, s: (b, 0, s)),         # target_x tile
    ]
    # Weights / biases: full arrays, constant index -> fetched once, VMEM-resident.
    in_specs += [pl.BlockSpec(p.shape, lambda b, s: (0, 0)) for p in flat]

    out = pl.pallas_call(
        kernel,
        out_shape=jax.ShapeDtypeStruct((B, 2, s_pad), jnp.float32),
        grid=grid,
        in_specs=in_specs,
        out_specs=pl.BlockSpec((1, 2, tile_s), lambda b, s: (b, 0, s)),
        compiler_params=pltpu.CompilerParams(
            dimension_semantics=("parallel", "parallel")),
    )(rep0, x_t, *flat)

    mu = out[:, 0, :S, None]                                          # (B, S, 1)
    sigma = out[:, 1, :S, None]
    return mu, sigma


def deterministic_decoder_forward(params, representation, target_x,
                                  matmul_dtype=jnp.float32, tile_s=None):
    """Matches DeterministicDecoder.forward semantics.

    representation: (B, R) float32
    target_x      : (B, S, D) float32
    returns (dist, mu, sigma) with mu, sigma of shape (B, S, 1).

    Note: default matmul_dtype=float32 (recommended on v5e; these matmuls are
    nowhere near MXU-bound). bfloat16 only casts the matmul operands / HBM
    streams; accumulation and inter-layer activations stay f32.
    """
    B, S, _ = target_x.shape

    # Lane tile over the set dimension (multiple of 128). Large default tile
    # amortizes the ~0.35us/grid-step overhead; everything stays tiny in VMEM
    # because the layout is lane-dense (well under the 32 MiB scoped default,
    # even on v7x's 64 MiB VMEM).
    if tile_s is None:
        tile_s = 2048
    tile_s = max(128, _round_up(int(tile_s), 128))
    s_min = _round_up(S, 128)
    tile_s = min(tile_s, s_min)
    # v7x has 2 TensorCores: if batch alone can't fill them, split the set axis.
    if B == 1 and s_min // tile_s < 2 and s_min >= 256:
        tile_s = _round_up(s_min // 2, 128)
    s_pad = _round_up(S, tile_s)

    mu, sigma = _run_decoder(tuple(params), representation, target_x,
                             matmul_dtype=matmul_dtype, tile_s=tile_s, s_pad=s_pad)
    return Normal(loc=mu, scale=sigma), mu, sigma


def _reference_forward(params, representation, target_x):
    """Plain-JAX reference matching the torch module exactly."""
    B, S, D = target_x.shape
    R = representation.shape[-1]
    rep_b = jnp.broadcast_to(representation[:, None, :], (B, S, R))
    h = jnp.concatenate([rep_b, target_x], -1).reshape(B * S, -1)
    for i, (w, b) in enumerate(params):
        h = h @ w + b
        if i < len(params) - 1:
            h = jnp.maximum(h, 0.0)
    mu = h[:, 0:1].reshape(B, S, 1)
    sigma = (0.1 + 0.9 * jax.nn.softplus(h[:, 1:2])).reshape(B, S, 1)
    return mu, sigma


if __name__ == "__main__":
    # Shapes consistent with the module's forward:
    #   batch=2, set_size=8, d=2, representation_size=30
    #   sizes = [rep_size + d, hidden, hidden, 2] -> [32, 32, 32, 2]
    batch_size, set_size, d, rep_size, hidden = 2, 8, 2, 30, 32
    sizes = [rep_size + d, hidden, hidden, 2]

    key = jax.random.PRNGKey(0)
    k_rep, k_x, k_params = jax.random.split(key, 3)

    representation = jax.random.normal(k_rep, (batch_size, rep_size), jnp.float32)
    target_x = jax.random.normal(k_x, (batch_size, set_size, d), jnp.float32)
    params = init_params(k_params, sizes)

    # f32 run (tight check).
    dist, mu, sigma = deterministic_decoder_forward(params, representation, target_x)
    jax.block_until_ready((mu, sigma))

    mu_ref, sigma_ref = _reference_forward(params, representation, target_x)
    assert mu.shape == (batch_size, set_size, 1)
    assert sigma.shape == (batch_size, set_size, 1)
    assert jnp.allclose(mu, mu_ref, atol=1e-4, rtol=1e-4)
    assert jnp.allclose(sigma, sigma_ref, atol=1e-4, rtol=1e-4)
    assert bool(jnp.all(sigma > 0.1 - 1e-6))

    # Second config: non-128-divisible set size + multiple lane tiles
    # (exercises the grid, tail padding, and pipelining paths).
    set_size2 = 300
    k_rep2, k_x2 = jax.random.split(jax.random.PRNGKey(1))
    representation2 = jax.random.normal(k_rep2, (batch_size, rep_size), jnp.float32)
    target_x2 = jax.random.normal(k_x2, (batch_size, set_size2, d), jnp.float32)
    _, mu2, sigma2 = deterministic_decoder_forward(
        params, representation2, target_x2, tile_s=128)
    jax.block_until_ready((mu2, sigma2))
    mu2_ref, sigma2_ref = _reference_forward(params, representation2, target_x2)
    assert mu2.shape == (batch_size, set_size2, 1)
    assert jnp.allclose(mu2, mu2_ref, atol=1e-4, rtol=1e-4)
    assert jnp.allclose(sigma2, sigma2_ref, atol=1e-4, rtol=1e-4)

    # bf16 matmul-operand path (weights/x pre-cast in HBM, f32 activations); loose check.
    _, mu_bf, sigma_bf = deterministic_decoder_forward(
        params, representation, target_x, matmul_dtype=jnp.bfloat16)
    jax.block_until_ready((mu_bf, sigma_bf))
    assert jnp.allclose(mu_bf, mu_ref, atol=1e-1, rtol=1e-1)
    assert jnp.allclose(sigma_bf, sigma_ref, atol=1e-1, rtol=1e-1)

    print("KERNEL_OK")
</pallas_src>

<mosaic_0001>
module attributes {stable_mosaic.version = 11 : i64} {
  func.func @kernel(%arg0: i32, %arg1: i32, %arg2: memref<1x32x1xf32, #tpu.memory_space<vmem>>, %arg3: memref<1x2x128xf32, #tpu.memory_space<vmem>>, %arg4: memref<32x2xf32, #tpu.memory_space<vmem>>, %arg5: memref<32x32xf32, #tpu.memory_space<vmem>>, %arg6: memref<32x1xf32, #tpu.memory_space<vmem>>, %arg7: memref<2x32xf32, #tpu.memory_space<vmem>>, %arg8: memref<2x1xf32, #tpu.memory_space<vmem>>, %arg9: memref<1x2x128xf32, #tpu.memory_space<vmem>>) attributes {dimension_semantics = [#tpu.dimension_semantics<parallel>, #tpu.dimension_semantics<parallel>], iteration_bounds = array<i64: 2, 1>, scalar_prefetch = 0 : i64, scratch_operands = 0 : i64, tpu.core_type = #tpu.core_type<tc>, window_params = [{transform_indices = @transform_0, window_bounds = array<i64: 1, 32, 1>}, {transform_indices = @transform_1, window_bounds = array<i64: 1, 2, 128>}, {pipeline_mode = #tpu.pipeline_mode<synchronous>, transform_indices = @transform_2, window_bounds = array<i64: 32, 2>}, {pipeline_mode = #tpu.pipeline_mode<synchronous>, transform_indices = @transform_3, window_bounds = array<i64: 32, 32>}, {pipeline_mode = #tpu.pipeline_mode<synchronous>, transform_indices = @transform_4, window_bounds = array<i64: 32, 1>}, {pipeline_mode = #tpu.pipeline_mode<synchronous>, transform_indices = @transform_5, window_bounds = array<i64: 2, 32>}, {pipeline_mode = #tpu.pipeline_mode<synchronous>, transform_indices = @transform_6, window_bounds = array<i64: 2, 1>}, {transform_indices = @transform_7, window_bounds = array<i64: 1, 2, 128>}]} {
    %c0 = arith.constant 0 : index
    %c0_0 = arith.constant 0 : index
    %c0_1 = arith.constant 0 : index
    %0 = vector.load %arg3[%c0, %c0_0, %c0_1] : memref<1x2x128xf32, #tpu.memory_space<vmem>>, vector<1x2x128xf32>
    %1 = vector.shape_cast %0 : vector<1x2x128xf32> to vector<2x128xf32>
    %c0_2 = arith.constant 0 : index
    %c0_3 = arith.constant 0 : index
    %c0_4 = arith.constant 0 : index
    %2 = vector.load %arg2[%c0_2, %c0_3, %c0_4] : memref<1x32x1xf32, #tpu.memory_space<vmem>>, vector<1x32x1xf32>
    %3 = vector.shape_cast %2 : vector<1x32x1xf32> to vector<32x1xf32>
    %4 = vector.shape_cast %3 : vector<32x1xf32> to vector<32x1xf32>
    %5 = vector.broadcast %4 : vector<32x1xf32> to vector<32x128xf32>
    %c0_5 = arith.constant 0 : index
    %c0_6 = arith.constant 0 : index
    %6 = vector.load %arg4[%c0_5, %c0_6] : memref<32x2xf32, #tpu.memory_space<vmem>>, vector<32x1xf32>
    %7 = vector.extract_strided_slice %1 {offsets = [0, 0], sizes = [1, 128], strides = [1, 1]} : vector<2x128xf32> to vector<1x128xf32>
    %8 = vector.broadcast %6 : vector<32x1xf32> to vector<32x128xf32>
    %9 = vector.broadcast %7 : vector<1x128xf32> to vector<32x128xf32>
    %10 = arith.mulf %8, %9 : vector<32x128xf32>
    %11 = arith.addf %5, %10 : vector<32x128xf32>
    %c0_7 = arith.constant 0 : index
    %c1 = arith.constant 1 : index
    %12 = vector.load %arg4[%c0_7, %c1] : memref<32x2xf32, #tpu.memory_space<vmem>>, vector<32x1xf32>
    %13 = vector.extract_strided_slice %1 {offsets = [1, 0], sizes = [1, 128], strides = [1, 1]} : vector<2x128xf32> to vector<1x128xf32>
    %14 = vector.broadcast %12 : vector<32x1xf32> to vector<32x128xf32>
    %15 = vector.broadcast %13 : vector<1x128xf32> to vector<32x128xf32>
    %16 = arith.mulf %14, %15 : vector<32x128xf32>
    %17 = arith.addf %11, %16 : vector<32x128xf32>
    %cst = arith.constant 0.000000e+00 : f32
    %18 = vector.broadcast %cst : f32 to vector<32x128xf32>
    %19 = arith.maximumf %17, %18 : vector<32x128xf32>
    %c0_8 = arith.constant 0 : index
    %c0_9 = arith.constant 0 : index
    %20 = vector.load %arg6[%c0_8, %c0_9] : memref<32x1xf32, #tpu.memory_space<vmem>>, vector<32x1xf32>
    %c0_10 = arith.constant 0 : index
    %c0_11 = arith.constant 0 : index
    %21 = vector.load %arg5[%c0_10, %c0_11] : memref<32x32xf32, #tpu.memory_space<vmem>>, vector<32x32xf32>
    %cst_12 = arith.constant dense<0.000000e+00> : vector<32x128xf32>
    %22 = tpu.matmul %21, %19, %cst_12 {dimension_numbers = #tpu.dot_dimension_numbers<[1], [0], [0], [1], [0, 0, 1, 1], [], []>} : vector<32x32xf32>, vector<32x128xf32>, vector<32x128xf32> -> vector<32x128xf32>
    %23 = vector.broadcast %20 : vector<32x1xf32> to vector<32x128xf32>
    %24 = arith.addf %22, %23 : vector<32x128xf32>
    %cst_13 = arith.constant 0.000000e+00 : f32
    %25 = vector.broadcast %cst_13 : f32 to vector<32x128xf32>
    %26 = arith.maximumf %24, %25 : vector<32x128xf32>
    %c0_14 = arith.constant 0 : index
    %c0_15 = arith.constant 0 : index
    %27 = vector.load %arg8[%c0_14, %c0_15] : memref<2x1xf32, #tpu.memory_space<vmem>>, vector<2x1xf32>
    %c0_16 = arith.constant 0 : index
    %c0_17 = arith.constant 0 : index
    %28 = vector.load %arg7[%c0_16, %c0_17] : memref<2x32xf32, #tpu.memory_space<vmem>>, vector<2x32xf32>
    %cst_18 = arith.constant dense<0.000000e+00> : vector<2x128xf32>
    %29 = tpu.matmul %28, %26, %cst_18 {dimension_numbers = #tpu.dot_dimension_numbers<[1], [0], [0], [1], [0, 0, 1, 1], [], []>} : vector<2x32xf32>, vector<32x128xf32>, vector<2x128xf32> -> vector<2x128xf32>
    %30 = vector.broadcast %27 : vector<2x1xf32> to vector<2x128xf32>
    %31 = arith.addf %29, %30 : vector<2x128xf32>
    %32 = vector.extract_strided_slice %31 {offsets = [0, 0], sizes = [1, 128], strides = [1, 1]} : vector<2x128xf32> to vector<1x128xf32>
    %33 = vector.extract_strided_slice %31 {offsets = [1, 0], sizes = [1, 128], strides = [1, 1]} : vector<2x128xf32> to vector<1x128xf32>
    %cst_19 = arith.constant 0.000000e+00 : f32
    %34 = vector.broadcast %cst_19 : f32 to vector<1x128xf32>
    %35 = arith.maximumf %33, %34 : vector<1x128xf32>
    %36 = math.absf %33 : vector<1x128xf32>
    %cst_20 = arith.constant 0.000000e+00 : f32
    %37 = vector.broadcast %cst_20 : f32 to vector<1x128xf32>
    %38 = arith.subf %37, %36 : vector<1x128xf32>
    %39 = math.exp %38 : vector<1x128xf32>
    %40 = math.log1p %39 : vector<1x128xf32>
    %41 = arith.addf %35, %40 : vector<1x128xf32>
    %cst_21 = arith.constant 0.899999976 : f32
    %42 = vector.broadcast %cst_21 : f32 to vector<1x128xf32>
    %43 = arith.mulf %42, %41 : vector<1x128xf32>
    %cst_22 = arith.constant 1.000000e-01 : f32
    %44 = vector.broadcast %cst_22 : f32 to vector<1x128xf32>
    %45 = arith.addf %44, %43 : vector<1x128xf32>
    %46 = tpu.concatenate %32, %45 in 0 : vector<1x128xf32>, vector<1x128xf32> -> vector<2x128xf32>
    %c0_23 = arith.constant 0 : index
    %c0_24 = arith.constant 0 : index
    %c0_25 = arith.constant 0 : index
    %47 = vector.load %arg9[%c0_23, %c0_24, %c0_25] : memref<1x2x128xf32, #tpu.memory_space<vmem>>, vector<1x2x128xf32>
    %48 = vector.shape_cast %47 : vector<1x2x128xf32> to vector<2x128xf32>
    %49 = vector.shape_cast %46 : vector<2x128xf32> to vector<1x2x128xf32>
    tpu.vector_store %arg9[%c0_23, %c0_24, %c0_25], %49 {strides = array<i32>} : memref<1x2x128xf32, #tpu.memory_space<vmem>>, vector<1x2x128xf32>,
    return
  }
  func.func @transform_0(%arg0: i32, %arg1: i32) -> (i32, i32, i32) {
    %c0_i32 = arith.constant 0 : i32
    %c0_i32_0 = arith.constant 0 : i32
    %c0_i32_1 = arith.constant 0 : i32
    return %arg0, %c0_i32, %c0_i32_0 : i32, i32, i32
  }
  func.func @transform_1(%arg0: i32, %arg1: i32) -> (i32, i32, i32) {
    %c0_i32 = arith.constant 0 : i32
    %c0_i32_0 = arith.constant 0 : i32
    return %arg0, %c0_i32, %arg1 : i32, i32, i32
  }
  func.func @transform_2(%arg0: i32, %arg1: i32) -> (i32, i32) {
    %c0_i32 = arith.constant 0 : i32
    %c0_i32_0 = arith.constant 0 : i32
    %c0_i32_1 = arith.constant 0 : i32
    return %c0_i32, %c0_i32_0 : i32, i32
  }
  func.func @transform_3(%arg0: i32, %arg1: i32) -> (i32, i32) {
    %c0_i32 = arith.constant 0 : i32
    %c0_i32_0 = arith.constant 0 : i32
    %c0_i32_1 = arith.constant 0 : i32
    return %c0_i32, %c0_i32_0 : i32, i32
  }
  func.func @transform_4(%arg0: i32, %arg1: i32) -> (i32, i32) {
    %c0_i32 = arith.constant 0 : i32
    %c0_i32_0 = arith.constant 0 : i32
    %c0_i32_1 = arith.constant 0 : i32
    return %c0_i32, %c0_i32_0 : i32, i32
  }
  func.func @transform_5(%arg0: i32, %arg1: i32) -> (i32, i32) {
    %c0_i32 = arith.constant 0 : i32
    %c0_i32_0 = arith.constant 0 : i32
    %c0_i32_1 = arith.constant 0 : i32
    return %c0_i32, %c0_i32_0 : i32, i32
  }
  func.func @transform_6(%arg0: i32, %arg1: i32) -> (i32, i32) {
    %c0_i32 = arith.constant 0 : i32
    %c0_i32_0 = arith.constant 0 : i32
    %c0_i32_1 = arith.constant 0 : i32
    return %c0_i32, %c0_i32_0 : i32, i32
  }
  func.func @transform_7(%arg0: i32, %arg1: i32) -> (i32, i32, i32) {
    %c0_i32 = arith.constant 0 : i32
    %c0_i32_0 = arith.constant 0 : i32
    return %arg0, %c0_i32, %arg1 : i32, i32, i32
  }
}

</mosaic_0001>

<llo_original>
// kernel: _run_decoder.1
$region0: #{_run_decoder.1}
  #allocation0 [shape = 'u32[]', space=smem, size = 0x4, offset = 0x4, fixed_abs, tag = 'smem constant byte address 0x4 - core index']
  #allocation1 [shape = 'u32[144,128]{1,0:T(1,128)}', space=vmem, size = 0x12000, scoped, tag = 'internal scratch']
  %s0 = inlined_call_operand.vmem [shape: f32[2,32,1], index: 0, kind: input, shape index: {}]
  %s1 = inlined_call_operand.vmem [shape: f32[2,2,128], index: 1, kind: input, shape index: {}]
  %s2 = inlined_call_operand.vmem [shape: f32[32,2], index: 2, kind: input, shape index: {}]
  %s3 = inlined_call_operand.vmem [shape: f32[32,32], index: 3, kind: input, shape index: {}]
  %s4 = inlined_call_operand.vmem [shape: f32[32,1], index: 4, kind: input, shape index: {}]
  %s5 = inlined_call_operand.vmem [shape: f32[2,32], index: 5, kind: input, shape index: {}]
  %s6 = inlined_call_operand.vmem [shape: f32[2,1], index: 6, kind: input, shape index: {}]
  %s7 = inlined_call_operand.vmem [shape: f32[2,2,128], index: 7, kind: output, shape index: {}]
  %s8 = sld [smem:[#allocation0]]
  $region61: #{_run_decoder.1} parent=0
    _
  %s10 = ssub.s32 1, %s8
  %s11 = scalar_select 0, %s10, %s8
  loop: start=0, step=1, limit=4
  $region2: #{_run_decoder.1} parent=0 // loop_pre_header
    _
  $region3: #{_run_decoder.1} parent=0 // loop_header
    %s13 = sphi 0, %s17
    %p14 = scmp.ge.s32.totalorder %s13, 4
    %s20 = sphi 0, %s32
    %s21 = sphi 0, %s28
    %s22 = sphi 0, %s20
    %s23 = sphi 0, %s21
    %s24 = sphi 0, %s22
    %s25 = sphi 0, %s23
    %s35 = sphi 0, %s37
    %s38 = sphi 0, %s35
    %s39 = sphi 0, %s38
    %s55 = sphi 0, %s39
    %s63 = sphi 0, %s65
    %s66 = sphi 0, %s63
    %s67 = sphi 0, %s66
    %s83 = sphi 0, %s67
    %s87 = sphi 0, %s87
    %s89 = sphi 0, %s87
    %s90 = sphi 0, %s89
    %s104 = sphi 0, %s90
    %s108 = sphi 0, %s108
    %s110 = sphi 0, %s108
    %s111 = sphi 0, %s110
    %s125 = sphi 0, %s111
    %s129 = sphi 0, %s129
    %s131 = sphi 0, %s129
    %s132 = sphi 0, %s131
    %s146 = sphi 0, %s132
    %s150 = sphi 0, %s150
    %s152 = sphi 0, %s150
    %s153 = sphi 0, %s152
    %s167 = sphi 0, %s153
    %s171 = sphi 0, %s171
    %s173 = sphi 0, %s171
    %s174 = sphi 0, %s173
    %s188 = sphi 0, %s174
    %s196 = sphi 0, %s198
    %s199 = sphi 0, %s196
    %s200 = sphi 0, %s199
    %s216 = sphi 0, %s200
  $region4: #{_run_decoder.1} parent=0 // loop_header_branch
    %16 = sbr.rel (%p14) target = $region8
  $region5: #{_run_decoder.1} parent=0 // loop_body
    %s18 = ssub.s32 %s13, 1
    %s19 = ssub.s32 %s13, 2
    %s26 = sadd.s32 1, %s21
    %p27 = scmp.ge.s32.totalorder %s26, 1
    %s28 = scalar_select %p27, 0, %s26
    %s29 = sadd.s32 1, %s20
    %s30 = scalar_select %p27, %s29, %s20
    %p31 = scmp.ge.s32.totalorder %s30, 2
    %s32 = scalar_select %p31, 0, %s30
    %s33 = ssub.s32 %s20, %s32
    %p34 = scmp.eq.s32.totalorder %s33, 0
    %s36 = sadd.s32 %s35, 1
    %s37 = scalar_select %p34, %s35, %s36
    %p40 = pneg %p34
    %p41 = scmp.eq.s32.totalorder %s13, 1
    %p42 = por %p40, %p41
    %p43 = scmp.ne.s32.totalorder %s35, %s38
    %p44 = scmp.eq.s32.totalorder %s13, 0
    %p45 = por %p43, %p44
    %p46 = scmp.ne.s32.totalorder %s35, %s38
    %p47 = scmp.eq.s32.totalorder %s18, 1
    %p48 = por %p46, %p47
    %p49 = scmp.ne.s32.totalorder %s38, %s39
    %p50 = scmp.eq.s32.totalorder %s18, 0
    %p51 = por %p49, %p50
    %p52 = scmp.ne.s32.totalorder %s38, %s39
    %p53 = scmp.eq.s32.totalorder %s19, 1
    %p54 = por %p52, %p53
    %p56 = scmp.ne.s32.totalorder %s39, %s55
    %p57 = scmp.eq.s32.totalorder %s19, 0
    %p58 = por %p56, %p57
    %s59 = ssub.s32 %s20, %s32
    %s60 = ssub.s32 %s21, %s28
    %s61 = sor.u32 %s59, %s60
    %p62 = scmp.eq.s32.totalorder %s61, 0
    %s64 = sadd.s32 %s63, 1
    %s65 = scalar_select %p62, %s63, %s64
    %p68 = pneg %p62
    %p69 = scmp.eq.s32.totalorder %s13, 1
    %p70 = por %p68, %p69
    %p71 = scmp.ne.s32.totalorder %s63, %s66
    %p72 = scmp.eq.s32.totalorder %s13, 0
    %p73 = por %p71, %p72
    %p74 = scmp.ne.s32.totalorder %s63, %s66
    %p75 = scmp.eq.s32.totalorder %s18, 1
    %p76 = por %p74, %p75
    %p77 = scmp.ne.s32.totalorder %s66, %s67
    %p78 = scmp.eq.s32.totalorder %s18, 0
    %p79 = por %p77, %p78
    %p80 = scmp.ne.s32.totalorder %s66, %s67
    %p81 = scmp.eq.s32.totalorder %s19, 1
    %p82 = por %p80, %p81
    %p84 = scmp.ne.s32.totalorder %s67, %s83
    %p85 = scmp.eq.s32.totalorder %s19, 0
    %p86 = por %p84, %p85
    %s88 = sadd.s32 %s87, 1
    %p91 = scmp.eq.s32.totalorder %s13, 1
    %p92 = scmp.ne.s32.totalorder %s87, %s89
    %p93 = scmp.eq.s32.totalorder %s13, 0
    %p94 = por %p92, %p93
    %p95 = scmp.ne.s32.totalorder %s87, %s89
    %p96 = scmp.eq.s32.totalorder %s18, 1
    %p97 = por %p95, %p96
    %p98 = scmp.ne.s32.totalorder %s89, %s90
    %p99 = scmp.eq.s32.totalorder %s18, 0
    %p100 = por %p98, %p99
    %p101 = scmp.ne.s32.totalorder %s89, %s90
    %p102 = scmp.eq.s32.totalorder %s19, 1
    %p103 = por %p101, %p102
    %p105 = scmp.ne.s32.totalorder %s90, %s104
    %p106 = scmp.eq.s32.totalorder %s19, 0
    %p107 = por %p105, %p106
    %s109 = sadd.s32 %s108, 1
    %p112 = scmp.eq.s32.totalorder %s13, 1
    %p113 = scmp.ne.s32.totalorder %s108, %s110
    %p114 = scmp.eq.s32.totalorder %s13, 0
    %p115 = por %p113, %p114
    %p116 = scmp.ne.s32.totalorder %s108, %s110
    %p117 = scmp.eq.s32.totalorder %s18, 1
    %p118 = por %p116, %p117
    %p119 = scmp.ne.s32.totalorder %s110, %s111
    %p120 = scmp.eq.s32.totalorder %s18, 0
    %p121 = por %p119, %p120
    %p122 = scmp.ne.s32.totalorder %s110, %s111
    %p123 = scmp.eq.s32.totalorder %s19, 1
    %p124 = por %p122, %p123
    %p126 = scmp.ne.s32.totalorder %s111, %s125
    %p127 = scmp.eq.s32.totalorder %s19, 0
    %p128 = por %p126, %p127
    %s130 = sadd.s32 %s129, 1
    %p133 = scmp.eq.s32.totalorder %s13, 1
    %p134 = scmp.ne.s32.totalorder %s129, %s131
    %p135 = scmp.eq.s32.totalorder %s13, 0
    %p136 = por %p134, %p135
    %p137 = scmp.ne.s32.totalorder %s129, %s131
    %p138 = scmp.eq.s32.totalorder %s18, 1
    %p139 = por %p137, %p138
    %p140 = scmp.ne.s32.totalorder %s131, %s132
    %p141 = scmp.eq.s32.totalorder %s18, 0
    %p142 = por %p140, %p141
    %p143 = scmp.ne.s32.totalorder %s131, %s132
    %p144 = scmp.eq.s32.totalorder %s19, 1
    %p145 = por %p143, %p144
    %p147 = scmp.ne.s32.totalorder %s132, %s146
    %p148 = scmp.eq.s32.totalorder %s19, 0
    %p149 = por %p147, %p148
    %s151 = sadd.s32 %s150, 1
    %p154 = scmp.eq.s32.totalorder %s13, 1
    %p155 = scmp.ne.s32.totalorder %s150, %s152
    %p156 = scmp.eq.s32.totalorder %s13, 0
    %p157 = por %p155, %p156
    %p158 = scmp.ne.s32.totalorder %s150, %s152
    %p159 = scmp.eq.s32.totalorder %s18, 1
    %p160 = por %p158, %p159
    %p161 = scmp.ne.s32.totalorder %s152, %s153
    %p162 = scmp.eq.s32.totalorder %s18, 0
    %p163 = por %p161, %p162
    %p164 = scmp.ne.s32.totalorder %s152, %s153
    %p165 = scmp.eq.s32.totalorder %s19, 1
    %p166 = por %p164, %p165
    %p168 = scmp.ne.s32.totalorder %s153, %s167
    %p169 = scmp.eq.s32.totalorder %s19, 0
    %p170 = por %p168, %p169
    %s172 = sadd.s32 %s171, 1
    %p175 = scmp.eq.s32.totalorder %s13, 1
    %p176 = scmp.ne.s32.totalorder %s171, %s173
    %p177 = scmp.eq.s32.totalorder %s13, 0
    %p178 = por %p176, %p177
    %p179 = scmp.ne.s32.totalorder %s171, %s173
    %p180 = scmp.eq.s32.totalorder %s18, 1
    %p181 = por %p179, %p180
    %p182 = scmp.ne.s32.totalorder %s173, %s174
    %p183 = scmp.eq.s32.totalorder %s18, 0
    %p184 = por %p182, %p183
    %p185 = scmp.ne.s32.totalorder %s173, %s174
    %p186 = scmp.eq.s32.totalorder %s19, 1
    %p187 = por %p185, %p186
    %p189 = scmp.ne.s32.totalorder %s174, %s188
    %p190 = scmp.eq.s32.totalorder %s19, 0
    %p191 = por %p189, %p190
    %s192 = ssub.s32 %s20, %s32
    %s193 = ssub.s32 %s21, %s28
    %s194 = sor.u32 %s192, %s193
    %p195 = scmp.eq.s32.totalorder %s194, 0
    %s197 = sadd.s32 %s196, 1
    %s198 = scalar_select %p195, %s196, %s197
    %p201 = pneg %p195
    %p202 = scmp.eq.s32.totalorder %s13, 1
    %p203 = por %p201, %p202
    %p204 = scmp.ne.s32.totalorder %s196, %s199
    %p205 = scmp.eq.s32.totalorder %s13, 0
    %p206 = por %p204, %p205
    %p207 = scmp.ne.s32.totalorder %s196, %s199
    %p208 = scmp.eq.s32.totalorder %s18, 1
    %p209 = por %p207, %p208
    %p210 = scmp.ne.s32.totalorder %s199, %s200
    %p211 = scmp.eq.s32.totalorder %s18, 0
    %p212 = por %p210, %p211
    %p213 = scmp.ne.s32.totalorder %s199, %s200
    %p214 = scmp.eq.s32.totalorder %s19, 1
    %p215 = por %p213, %p214
    %p217 = scmp.ne.s32.totalorder %s200, %s216
    %p218 = scmp.eq.s32.totalorder %s19, 0
    %p219 = por %p217, %p218
    %p220 = scmp.le.s32.totalorder 1, %s13
    %p221 = scmp.lt.s32.totalorder %s13, 3
    %p222 = pnand %p220, %p221
    %p223 = pneg %p222
    // Predicated region
    $region9: #{_run_decoder.1} parent=5 // pred_check
      _
    $region10: #{_run_decoder.1} parent=5 // pred_check_branch
      %225 = sbr.rel (%p222) target = $region12
    $region11: #{_run_decoder.1} parent=5 // pred_region
      %s226 = ssub.s32 %s13, 1
      // Predicated region
      $region13: #{_run_decoder.1} parent=11 // pred_check
        %p227 = pneg %p100
      $region14: #{_run_decoder.1} parent=11 // pred_check_branch
        %229 = sbr.rel (%p227) target = $region16
      $region15: #{_run_decoder.1} parent=11 // pred_region
        _
      $region16: #{_run_decoder.1} parent=11 // pred_fallthru
        _
      // Predicated region
      $region17: #{_run_decoder.1} parent=11 // pred_check
        %p230 = pneg %p121
      $region18: #{_run_decoder.1} parent=11 // pred_check_branch
        %232 = sbr.rel (%p230) target = $region20
      $region19: #{_run_decoder.1} parent=11 // pred_region
        _
      $region20: #{_run_decoder.1} parent=11 // pred_fallthru
        _
      // Predicated region
      $region21: #{_run_decoder.1} parent=11 // pred_check
        %p233 = pneg %p142
      $region22: #{_run_decoder.1} parent=11 // pred_check_branch
        %235 = sbr.rel (%p233) target = $region24
      $region23: #{_run_decoder.1} parent=11 // pred_region
        _
      $region24: #{_run_decoder.1} parent=11 // pred_fallthru
        _
      // Predicated region
      $region25: #{_run_decoder.1} parent=11 // pred_check
        %p236 = pneg %p163
      $region26: #{_run_decoder.1} parent=11 // pred_check_branch
        %238 = sbr.rel (%p236) target = $region28
      $region27: #{_run_decoder.1} parent=11 // pred_region
        _
      $region28: #{_run_decoder.1} parent=11 // pred_fallthru
        _
      // Predicated region
      $region29: #{_run_decoder.1} parent=11 // pred_check
        %p239 = pneg %p184
      $region30: #{_run_decoder.1} parent=11 // pred_check_branch
        %241 = sbr.rel (%p239) target = $region32
      $region31: #{_run_decoder.1} parent=11 // pred_region
        _
      $region32: #{_run_decoder.1} parent=11 // pred_fallthru
        _
    $region12: #{_run_decoder.1} parent=5 // pred_fallthru
      _
    %p242 = scmp.lt.s32.totalorder %s13, 2
    // Predicated region
    $region33: #{_run_decoder.1} parent=5 // pred_check
      %p243 = pneg %p242
    $region34: #{_run_decoder.1} parent=5 // pred_check_branch
      %245 = sbr.rel (%p243) target = $region36
    $region35: #{_run_decoder.1} parent=5 // pred_region
      // Predicated region
      $region37: #{_run_decoder.1} parent=35 // pred_check
        %p246 = pneg %p45
      $region38: #{_run_decoder.1} parent=35 // pred_check_branch
        %248 = sbr.rel (%p246) target = $region40
      $region39: #{_run_decoder.1} parent=35 // pred_region
        %p249 = scmp.lt.s32.totalorder %s20, 1
        %s250 = scalar_select %p249, %s20, 1
        %s251 = smul.addr %s250, 4
        %s252 = smul.addr %s251, 8
        %s253 = scalar_lea.vmem %s0, %s252
      $region40: #{_run_decoder.1} parent=35 // pred_fallthru
        _
      // Predicated region
      $region41: #{_run_decoder.1} parent=35 // pred_check
        %p254 = pneg %p73
      $region42: #{_run_decoder.1} parent=35 // pred_check_branch
        %256 = sbr.rel (%p254) target = $region44
      $region43: #{_run_decoder.1} parent=35 // pred_region
        %p257 = scmp.lt.s32.totalorder %s20, 1
        %s258 = scalar_select %p257, %s20, 1
        %p259 = scmp.lt.s32.totalorder %s21, 0
        %s260 = scalar_select %p259, %s21, 0
        %s261 = sadd.s32 %s260, %s258
        %s262 = smul.addr %s261, 2
        %s263 = scalar_lea.vmem %s1, %s262
      $region44: #{_run_decoder.1} parent=35 // pred_fallthru
        _
    $region36: #{_run_decoder.1} parent=5 // pred_fallthru
      _
    %p264 = scmp.le.s32.totalorder 1, %s13
    %p265 = scmp.lt.s32.totalorder %s13, 3
    %p266 = pnand %p264, %p265
    %p267 = pneg %p266
    // Predicated region
    $region45: #{_run_decoder.1} parent=5 // pred_check
      _
    $region46: #{_run_decoder.1} parent=5 // pred_check_branch
      %269 = sbr.rel (%p266) target = $region48
    $region47: #{_run_decoder.1} parent=5 // pred_region
      %s270 = ssub.s32 %s13, 1
      %p271 = scmp.lt.s32.totalorder %s22, 1
      %s272 = scalar_select %p271, %s22, 1
      %s273 = smul.addr %s272, 4
      %s274 = smul.addr %s273, 8
      %s275 = scalar_lea.vmem %s0, %s274
      %p276 = pneg %p51
      %p277 = pneg %p48
      %p278 = scmp.lt.s32.totalorder %s22, 1
      %s279 = scalar_select %p278, %s22, 1
      %p280 = scmp.lt.s32.totalorder %s23, 0
      %s281 = scalar_select %p280, %s23, 0
      %s282 = sadd.s32 %s281, %s279
      %s283 = smul.addr %s282, 2
      %s284 = scalar_lea.vmem %s1, %s283
      %p285 = pneg %p79
      %p286 = pneg %p76
      %p287 = pneg %p100
      %p288 = pneg %p97
      %p289 = pneg %p121
      %p290 = pneg %p118
      %p291 = pneg %p142
      %p292 = pneg %p139
      %p293 = pneg %p163
      %p294 = pneg %p160
      %p295 = pneg %p184
      %p296 = pneg %p181
      %p297 = pneg %p212
      %p298 = pneg %p209
      %p299 = scmp.lt.s32.totalorder %s22, 1
      %s300 = scalar_select %p299, %s22, 1
      %p301 = scmp.lt.s32.totalorder %s23, 0
      %s302 = scalar_select %p301, %s23, 0
      %s303 = sadd.s32 %s302, %s300
      %s304 = smul.addr %s303, 2
      %s305 = scalar_lea.vmem %s7, %s304
      %p306 = scmp.lt.s32.totalorder %s22, 1
      %s307 = scalar_select %p306, %s22, 1
      %s308 = smul.addr %s307, 4
      %s309 = smul.addr %s308, 8
      %s310 = scalar_lea.vmem %s0, %s309
      %p311 = scmp.lt.s32.totalorder %s22, 1
      %s312 = scalar_select %p311, %s22, 1
      %p313 = scmp.lt.s32.totalorder %s23, 0
      %s314 = scalar_select %p313, %s23, 0
      %s315 = sadd.s32 %s314, %s312
      %s316 = smul.addr %s315, 2
      %s317 = scalar_lea.vmem %s1, %s316
      %p318 = scmp.lt.s32.totalorder %s22, 1
      %s319 = scalar_select %p318, %s22, 1
      %p320 = scmp.lt.s32.totalorder %s23, 0
      %s321 = scalar_select %p320, %s23, 0
      %s322 = sadd.s32 %s321, %s319
      %s323 = smul.addr %s322, 2
      %s324 = scalar_lea.vmem %s7, %s323
      %v325 = vld [vmem:[%s317] sm:$0x3]
      %v326 = vld [vmem:[%s310] sm:$0xff]
      %v327 = vld [vmem:[%s310 + $0x8] sm:$0xff]
      %v328 = vld [vmem:[%s310 + $0x10] sm:$0xff]
      %v329 = vld [vmem:[%s310 + $0x18] sm:$0xff]
      %331 = vset.pattern.permute.xlu0 0
      %332 = vperm.xlu0 %331, %v326
      %v333 = vpop.permute.xlu0 %332
      %336 = vset.pattern.permute.xlu0 0
      %337 = vperm.xlu0 %336, %v327
      %v338 = vpop.permute.xlu0 %337
      %341 = vset.pattern.permute.xlu0 0
      %342 = vperm.xlu0 %341, %v328
      %v343 = vpop.permute.xlu0 %342
      %346 = vset.pattern.permute.xlu0 0
      %347 = vperm.xlu0 %346, %v329
      %v348 = vpop.permute.xlu0 %347
      %v350 = vld [vmem:[%s2] sm:$0xff]
      %v351 = vld [vmem:[%s2 + $0x8] sm:$0xff]
      %v352 = vld [vmem:[%s2 + $0x10] sm:$0xff]
      %v353 = vld [vmem:[%s2 + $0x18] sm:$0xff]
      %355 = vset.pattern.permute.xlu0 0
      %356 = vperm.xlu0 %355, %v350
      %v357 = vpop.permute.xlu0 %356
      %360 = vset.pattern.permute.xlu0 0
      %361 = vperm.xlu0 %360, %v351
      %v362 = vpop.permute.xlu0 %361
      %365 = vset.pattern.permute.xlu0 0
      %366 = vperm.xlu0 %365, %v352
      %v367 = vpop.permute.xlu0 %366
      %370 = vset.pattern.permute.xlu0 0
      %371 = vperm.xlu0 %370, %v353
      %v372 = vpop.permute.xlu0 %371
      %v374 = vlaneseq
      %v375 = vshrl.u32 %v374, 7
      %v376 = vsub.s32 0, %v375
      %v377 = vrot.slane %v325, %v376
      %v378 = vmul.f32 %v357, %v377
      %v379 = vmul.f32 %v362, %v377
      %v380 = vmul.f32 %v367, %v377
      %v381 = vmul.f32 %v372, %v377
      %v382 = vadd.f32 %v333, %v378
      %v383 = vadd.f32 %v338, %v379
      %v384 = vadd.f32 %v343, %v380
      %v385 = vadd.f32 %v348, %v381
      %386 = vset.pattern.permute.xlu0 1
      %387 = vperm.xlu0 %386, %v350
      %v388 = vpop.permute.xlu0 %387
      %390 = vset.pattern.permute.xlu0 1
      %391 = vperm.xlu0 %390, %v351
      %v392 = vpop.permute.xlu0 %391
      %394 = vset.pattern.permute.xlu0 1
      %395 = vperm.xlu0 %394, %v352
      %v396 = vpop.permute.xlu0 %395
      %398 = vset.pattern.permute.xlu0 1
      %399 = vperm.xlu0 %398, %v353
      %v400 = vpop.permute.xlu0 %399
      %v402 = vlaneseq
      %v403 = vshrl.u32 %v402, 7
      %v404 = vsub.s32 1, %v403
      %v405 = vrot.slane %v325, %v404
      %v406 = vmul.f32 %v388, %v405
      %v407 = vmul.f32 %v392, %v405
      %v408 = vmul.f32 %v396, %v405
      %v409 = vmul.f32 %v400, %v405
      %v410 = vadd.f32 %v382, %v406
      %v411 = vadd.f32 %v383, %v407
      %v412 = vadd.f32 %v384, %v408
      %v413 = vadd.f32 %v385, %v409
      %v414 = vmax.f32 %v410, 0.0
      %v415 = vmax.f32 %v411, 0.0
      %v416 = vmax.f32 %v412, 0.0
      %v417 = vmax.f32 %v413, 0.0
      %v418 = vld [vmem:[%s4] sm:$0xff]
      %v419 = vld [vmem:[%s4 + $0x8] sm:$0xff]
      %v420 = vld [vmem:[%s4 + $0x10] sm:$0xff]
      %v421 = vld [vmem:[%s4 + $0x18] sm:$0xff]
      %v422 = vld [vmem:[%s3] sm:$0xff]
      %v423 = vld [vmem:[%s3 + $0x8] sm:$0xff]
      %v424 = vld [vmem:[%s3 + $0x10] sm:$0xff]
      %v425 = vld [vmem:[%s3 + $0x18] sm:$0xff]
      %427 = vset.pattern.permute.xlu0 0
      %428 = vperm.xlu0 %427, %v418
      %v429 = vpop.permute.xlu0 %428
      %432 = vset.pattern.permute.xlu0 0
      %433 = vperm.xlu0 %432, %v419
      %v434 = vpop.permute.xlu0 %433
      %437 = vset.pattern.permute.xlu0 0
      %438 = vperm.xlu0 %437, %v420
      %v439 = vpop.permute.xlu0 %438
      %442 = vset.pattern.permute.xlu0 0
      %443 = vperm.xlu0 %442, %v421
      %v444 = vpop.permute.xlu0 %443
      %vm446 = vcmask 261120
      %v448 = vsel %vm446, %v422, 0
      %v451 = vsel %vm446, %v423, 0
      %v454 = vsel %vm446, %v424, 0
      %v457 = vsel %vm446, %v425, 0
      %459 = vmatprep.subr.mxu0 0.0
      %460 = vmatpush1.msra.mxu0 %v414
      %461 = vmatprep.subr.mxu0 0.0
      %462 = vmatpush1.msra.mxu0 %v415
      %463 = vmatprep.subr.mxu0 0.0
      %464 = vmatpush1.msra.mxu0 %v416
      %465 = vmatprep.subr.mxu0 0.0
      %466 = vmatpush1.msra.mxu0 %v417
      %467 = vmatprep.subr.mxu0 0.0
      %468 = vmatpush1.msra.mxu0 0.0
      %469 = vmatprep.subr.mxu0 0.0
      %470 = vmatpush1.msra.mxu0 0.0
      %471 = vmatprep.subr.mxu0 0.0
      %472 = vmatpush1.msra.mxu0 0.0
      %473 = vmatprep.subr.mxu0 0.0
      %474 = vmatpush1.msra.mxu0 0.0
      %475 = vmatprep.subr.mxu0 0.0
      %476 = vmatpush1.msra.mxu0 0.0
      %477 = vmatprep.subr.mxu0 0.0
      %478 = vmatpush1.msra.mxu0 0.0
      %479 = vmatprep.subr.mxu0 0.0
      %480 = vmatpush1.msra.mxu0 0.0
      %481 = vmatprep.subr.mxu0 0.0
      %482 = vmatpush1.msra.mxu0 0.0
      %483 = vmatprep.subr.mxu0 0.0
      %484 = vmatpush1.msra.mxu0 0.0
      %485 = vmatprep.subr.mxu0 0.0
      %486 = vmatpush1.msra.mxu0 0.0
      %487 = vmatprep.subr.mxu0 0.0
      %488 = vmatpush1.msra.mxu0 0.0
      %489 = vmatprep.subr.mxu0 0.0
      %490 = vmatpush1.msra.mxu0 0.0
      %491 = vmatprep.subr.mxu0 0.0
      %492 = vmatpush1.msra.mxu0 0.0
      %493 = vmatprep.subr.mxu0 0.0
      %494 = vmatpush1.msra.mxu0 0.0
      %495 = vmatprep.subr.mxu0 0.0
      %496 = vmatpush1.msra.mxu0 0.0
      %497 = vmatprep.subr.mxu0 0.0
      %498 = vmatpush1.msra.mxu0 0.0
      %499 = vmatprep.subr.mxu0 0.0
      %500 = vmatpush1.msra.mxu0 0.0
      %501 = vmatprep.subr.mxu0 0.0
      %502 = vmatpush1.msra.mxu0 0.0
      %503 = vmatprep.subr.mxu0 0.0
      %504 = vmatpush1.msra.mxu0 0.0
      %505 = vmatprep.subr.mxu0 0.0
      %506 = vmatpush1.msra.mxu0 0.0
      %507 = vmatprep.subr.mxu0 0.0
      %508 = vmatpush1.msra.mxu0 0.0
      %509 = vmatprep.subr.mxu0 0.0
      %510 = vmatpush1.msra.mxu0 0.0
      %511 = vmatprep.subr.mxu0 0.0
      %512 = vmatpush1.msra.mxu0 0.0
      %513 = vmatprep.subr.mxu0 0.0
      %514 = vmatpush1.msra.mxu0 0.0
      %515 = vmatprep.subr.mxu0 0.0
      %516 = vmatpush1.msra.mxu0 0.0
      %517 = vmatprep.subr.mxu0 0.0
      %518 = vmatpush1.msra.mxu0 0.0
      %519 = vmatprep.subr.mxu0 0.0
      %520 = vmatpush1.msra.mxu0 0.0
      %521 = vmatprep.subr.mxu0 0.0
      %522 = vmatpush1.msra.mxu0 0.0
      %523 = vmatprep.mubr.f32.mxu0 0.0
      %524 = vmatmul.mubr.f32.gmra.mrb[0].mxu0 %v448
      %v525 = vpop.f32.mrb[0].mxu0
      %v526 = vadd.f32 %v429, %v525
      %v527 = vpop.f32.mrb[0].mxu0
      %528 = vmatprep.mubr.f32.mxu0 0.0
      %529 = vmatmul.mubr.f32.gmra.mrb[0].mxu0 %v451
      %v530 = vpop.f32.mrb[0].mxu0
      %v531 = vadd.f32 %v434, %v530
      %v532 = vpop.f32.mrb[0].mxu0
      %533 = vmatprep.mubr.f32.mxu0 0.0
      %534 = vmatmul.mubr.f32.gmra.mrb[0].mxu0 %v454
      %v535 = vpop.f32.mrb[0].mxu0
      %v536 = vadd.f32 %v439, %v535
      %v537 = vpop.f32.mrb[0].mxu0
      %538 = vmatprep.mubr.f32.mxu0 0.0
      %539 = vmatmul.mubr.f32.gmra.mrb[0].mxu0 %v457
      %v540 = vpop.f32.mrb[0].mxu0
      %v541 = vadd.f32 %v444, %v540
      %v542 = vpop.f32.mrb[0].mxu0
      %543 = vdwg.mxu0
      %v544 = vmax.f32 %v526, 0.0
      %v545 = vmax.f32 %v531, 0.0
      %v546 = vmax.f32 %v536, 0.0
      %v547 = vmax.f32 %v541, 0.0
      %v548 = vld [vmem:[%s6] sm:$0x3]
      %v549 = vld [vmem:[%s5] sm:$0x3]
      %551 = vset.pattern.permute.xlu0 0
      %552 = vperm.xlu0 %551, %v548
      %v553 = vpop.permute.xlu0 %552
      %v556 = vsel %vm446, %v549, 0
      %558 = vmatprep.subr.mxu0 0.0
      %559 = vmatpush1.msra.mxu0 %v544
      %560 = vmatprep.subr.mxu0 0.0
      %561 = vmatpush1.msra.mxu0 %v545
      %562 = vmatprep.subr.mxu0 0.0
      %563 = vmatpush1.msra.mxu0 %v546
      %564 = vmatprep.subr.mxu0 0.0
      %565 = vmatpush1.msra.mxu0 %v547
      %566 = vmatprep.subr.mxu0 0.0
      %567 = vmatpush1.msra.mxu0 0.0
      %568 = vmatprep.subr.mxu0 0.0
      %569 = vmatpush1.msra.mxu0 0.0
      %570 = vmatprep.subr.mxu0 0.0
      %571 = vmatpush1.msra.mxu0 0.0
      %572 = vmatprep.subr.mxu0 0.0
      %573 = vmatpush1.msra.mxu0 0.0
      %574 = vmatprep.subr.mxu0 0.0
      %575 = vmatpush1.msra.mxu0 0.0
      %576 = vmatprep.subr.mxu0 0.0
      %577 = vmatpush1.msra.mxu0 0.0
      %578 = vmatprep.subr.mxu0 0.0
      %579 = vmatpush1.msra.mxu0 0.0
      %580 = vmatprep.subr.mxu0 0.0
      %581 = vmatpush1.msra.mxu0 0.0
      %582 = vmatprep.subr.mxu0 0.0
      %583 = vmatpush1.msra.mxu0 0.0
      %584 = vmatprep.subr.mxu0 0.0
      %585 = vmatpush1.msra.mxu0 0.0
      %586 = vmatprep.subr.mxu0 0.0
      %587 = vmatpush1.msra.mxu0 0.0
      %588 = vmatprep.subr.mxu0 0.0
      %589 = vmatpush1.msra.mxu0 0.0
      %590 = vmatprep.subr.mxu0 0.0
      %591 = vmatpush1.msra.mxu0 0.0
      %592 = vmatprep.subr.mxu0 0.0
      %593 = vmatpush1.msra.mxu0 0.0
      %594 = vmatprep.subr.mxu0 0.0
      %595 = vmatpush1.msra.mxu0 0.0
      %596 = vmatprep.subr.mxu0 0.0
      %597 = vmatpush1.msra.mxu0 0.0
      %598 = vmatprep.subr.mxu0 0.0
      %599 = vmatpush1.msra.mxu0 0.0
      %600 = vmatprep.subr.mxu0 0.0
      %601 = vmatpush1.msra.mxu0 0.0
      %602 = vmatprep.subr.mxu0 0.0
      %603 = vmatpush1.msra.mxu0 0.0
      %604 = vmatprep.subr.mxu0 0.0
      %605 = vmatpush1.msra.mxu0 0.0
      %606 = vmatprep.subr.mxu0 0.0
      %607 = vmatpush1.msra.mxu0 0.0
      %608 = vmatprep.subr.mxu0 0.0
      %609 = vmatpush1.msra.mxu0 0.0
      %610 = vmatprep.subr.mxu0 0.0
      %611 = vmatpush1.msra.mxu0 0.0
      %612 = vmatprep.subr.mxu0 0.0
      %613 = vmatpush1.msra.mxu0 0.0
      %614 = vmatprep.subr.mxu0 0.0
      %615 = vmatpush1.msra.mxu0 0.0
      %616 = vmatprep.subr.mxu0 0.0
      %617 = vmatpush1.msra.mxu0 0.0
      %618 = vmatprep.subr.mxu0 0.0
      %619 = vmatpush1.msra.mxu0 0.0
      %620 = vmatprep.subr.mxu0 0.0
      %621 = vmatpush1.msra.mxu0 0.0
      %622 = vmatprep.mubr.f32.mxu0 0.0
      %623 = vmatmul.mubr.f32.gmra.mrb[0].mxu0 %v556
      %v624 = vpop.f32.mrb[0].mxu0
      %v625 = vadd.f32 %v553, %v624
      %v626 = vpop.f32.mrb[0].mxu0
      %627 = vdwg.mxu0
      %v628 = vmax.f32 %v625, 0.0
      %v629 = vand.u32 2147483647, %v625
      %v630 = vsub.f32 0.0, %v629
      %v631 = vmul.f32 %v630, 1.442695
      %v632 = vpow.pop %v631
      %v633 = vadd.f32 %v632, 1.0
      %v634 = vlog2.pop %v633
      %v635 = vmul.f32 %v634, 0.6931472
      %v636 = vmul.f32 -0.5, %v632
      %v637 = vadd.f32 %v636, 1.0
      %v638 = vmul.f32 %v637, %v632
      %v639 = vand.u32 2147483647, %v632
      %vm640 = vcmp.lt.f32.partialorder %v639, 0.0004427343
      %v641 = vsel %vm640, %v638, %v635
      %v642 = vadd.f32 %v628, %v641
      %v643 = vmul.f32 %v642, 0.9
      %v644 = vadd.f32 %v643, 0.1
      %vm645 = vcmask 1040384
      %v646 = vsel %vm645, %v625, %v644
      %647 = vst [vmem:[%s324] sm:$0x3] %v646
      %p648 = scmp.lt.s32.totalorder %s22, 1
      %s649 = scalar_select %p648, %s22, 1
      %p650 = scmp.lt.s32.totalorder %s23, 0
      %s651 = scalar_select %p650, %s23, 0
      %s652 = sadd.s32 %s651, %s649
      %s653 = smul.addr %s652, 2
      %s654 = scalar_lea.vmem %s7, %s653
      // Predicated region
      $region49: #{_run_decoder.1} parent=47 // pred_check
        %p655 = pneg %p209
      $region50: #{_run_decoder.1} parent=47 // pred_check_branch
        %657 = sbr.rel (%p655) target = $region52
      $region51: #{_run_decoder.1} parent=47 // pred_region
        _
      $region52: #{_run_decoder.1} parent=47 // pred_fallthru
        _
    $region48: #{_run_decoder.1} parent=5 // pred_fallthru
      _
    %p658 = scmp.le.s32.totalorder 2, %s13
    // Predicated region
    $region53: #{_run_decoder.1} parent=5 // pred_check
      %p659 = pneg %p658
    $region54: #{_run_decoder.1} parent=5 // pred_check_branch
      %661 = sbr.rel (%p659) target = $region56
    $region55: #{_run_decoder.1} parent=5 // pred_region
      %s662 = ssub.s32 %s13, 2
      // Predicated region
      $region57: #{_run_decoder.1} parent=55 // pred_check
        %p663 = pneg %p215
      $region58: #{_run_decoder.1} parent=55 // pred_check_branch
        %665 = sbr.rel (%p663) target = $region60
      $region59: #{_run_decoder.1} parent=55 // pred_region
        %p666 = scmp.lt.s32.totalorder %s24, 1
        %s667 = scalar_select %p666, %s24, 1
        %p668 = scmp.lt.s32.totalorder %s25, 0
        %s669 = scalar_select %p668, %s25, 0
        %s670 = sadd.s32 %s669, %s667
        %s671 = smul.addr %s670, 2
        %s672 = scalar_lea.vmem %s7, %s671
      $region60: #{_run_decoder.1} parent=55 // pred_fallthru
        _
    $region56: #{_run_decoder.1} parent=5 // pred_fallthru
      _
  $region6: #{_run_decoder.1} parent=0 // loop_footer
    %s17 = sadd.s32 1, %s13
  $region7: #{_run_decoder.1} parent=0 // loop_footer_branch
    %12 = sbr.rel target = $region3
  $region8: #{_run_decoder.1} parent=0 // loop_exit
    _

</llo_original>
